<compile_context>
chip_gen: v5e
topology: v5e:2x2
jax: 0.10.0
libtpu: 0.0.40
codegen_flags: <defaults>
</compile_context>

<pallas_src>
from typing import NamedTuple

import jax
import jax.numpy as jnp
from jax.experimental import pallas as pl
from jax.experimental.pallas import tpu as pltpu

_LANE = 128        # vreg lane width
_SUBLANE = 8       # vreg sublane count (f32)
_SMALL_K_MAX = 16  # below this contraction size, use the VPU path
_MAX_TM = 256
_MAX_TN = 512
_MAX_TK = 512
_VPU_MAX_TN = 256


def _round_up(x, m):
    return ((x + m - 1) // m) * m


def _pad_to(a, shape):
    """Zero-pad `a` up to `shape` (no-op if already that shape)."""
    if tuple(a.shape) == tuple(shape):
        return a
    buf = jnp.zeros(shape, a.dtype)
    return buf.at[tuple(slice(0, s) for s in a.shape)].set(a)


def _largest_dividing_tile(total, max_tile, unit):
    """Largest multiple of `unit` that divides `total` and is <= max_tile."""
    best = unit
    t = unit
    limit = min(total, max_tile)
    while t <= limit:
        if total % t == 0:
            best = t
        t += unit
    return best


class LinearParams(NamedTuple):
    w_t: jax.Array   # (k_pad, n_pad) pre-transposed, lane-padded weight
    b: jax.Array     # (1, n_pad) lane-padded bias
    in_dim: int
    out_dim: int
    use_mxu: bool


def init_linear_params(key, input_dim, output_dim, dtype=jnp.float32):
    """Mirror torch.nn.Linear default init: U(-1/sqrt(in), 1/sqrt(in))."""
    kw, kb = jax.random.split(key)
    bound = 1.0 / (input_dim ** 0.5)
    weight = jax.random.uniform(
        kw, (output_dim, input_dim), dtype=dtype, minval=-bound, maxval=bound)
    bias = jax.random.uniform(
        kb, (output_dim,), dtype=dtype, minval=-bound, maxval=bound)
    return weight, bias


def prepare_linear_params(weight, bias):
    """One-time layout prep, hoisted out of the per-call hot path.

    Transposes the PyTorch-layout (out_dim, in_dim) weight to (in_dim, out_dim)
    and zero-pads the lane (N) dim only to the 128-lane boundary so stores are
    lane-dense without over-padding. K is left unpadded when it fits a single
    tile (blocks spanning the full K dim need no 128 alignment).
    """
    out_dim, in_dim = weight.shape
    use_mxu = in_dim >= _SMALL_K_MAX
    n_pad = _round_up(out_dim, _LANE)
    if use_mxu and in_dim > _MAX_TK:
        k_pad = _round_up(in_dim, _LANE)   # K will be tiled on the grid
    else:
        k_pad = in_dim                      # single K block spans the full dim
    w_t = _pad_to(weight.T, (k_pad, n_pad))
    b2 = _pad_to(bias.reshape(1, out_dim), (1, n_pad))
    return LinearParams(w_t=w_t, b=b2, in_dim=in_dim, out_dim=out_dim,
                        use_mxu=use_mxu)


def _linear_vpu_kernel(x_ref, w_ref, b_ref, o_ref):
    """Tiny-K path: y = x @ w + b as K broadcast FMAs on the VPU (no MXU).

    x_ref: (tm, K) with K tiny; w_ref: (K, tn); b_ref: (1, tn);
    o_ref: (tm, tn) with tn a multiple of 128 (lane-dense store).
    """
    x = x_ref[...].astype(jnp.float32)
    w = w_ref[...].astype(jnp.float32)
    acc = jnp.broadcast_to(b_ref[...].astype(jnp.float32), o_ref.shape)
    for k in range(x_ref.shape[1]):  # static unroll; K < _SMALL_K_MAX
        acc = acc + x[:, k:k + 1] * w[k:k + 1, :]
    o_ref[...] = acc.astype(o_ref.dtype)


def _linear_mxu_k1_kernel(x_ref, w_ref, b_ref, o_ref):
    """Single-K-step path: no accumulator scratch, no pl.when, one MXU dot."""
    y = jnp.dot(x_ref[...], w_ref[...], preferred_element_type=jnp.float32)
    o_ref[...] = (y + b_ref[...].astype(jnp.float32)).astype(o_ref.dtype)


def _linear_mxu_kernel(x_ref, w_ref, b_ref, o_ref, acc_ref):
    """General path: tiled (M, N, K) matmul with an f32 VMEM accumulator."""
    k = pl.program_id(2)

    @pl.when(k == 0)
    def _init():
        acc_ref[...] = jnp.zeros_like(acc_ref)

    acc_ref[...] += jnp.dot(
        x_ref[...], w_ref[...], preferred_element_type=jnp.float32)

    @pl.when(k == pl.num_programs(2) - 1)
    def _finalize():
        o_ref[...] = (acc_ref[...]
                      + b_ref[...].astype(jnp.float32)).astype(o_ref.dtype)


def linear_classifier_forward(x, params: LinearParams):
    """y = x @ W^T + b  (torch.nn.Linear forward semantics). x: (batch, in_dim)."""
    batch, in_dim = x.shape
    assert in_dim == params.in_dim, "input feature dim mismatch"
    k_pad, n_pad = params.w_t.shape

    # ---- M tiling: avoid per-call x copies whenever shapes allow ----------
    if batch <= _MAX_TM:
        tm, m_pad = batch, batch                   # full-dim block, no padding
    elif batch % _SUBLANE == 0:
        tm = _largest_dividing_tile(batch, _MAX_TM, _SUBLANE)
        m_pad = batch                              # tiles divide batch exactly
    else:
        tm = _MAX_TM
        m_pad = _round_up(batch, tm)               # rare: pad ragged M

    if not params.use_mxu:
        # ---------------- Tiny-K VPU path (in_dim < 16) --------------------
        tn = _largest_dividing_tile(n_pad, _VPU_MAX_TN, _LANE)
        x_in = x if m_pad == batch else _pad_to(x, (m_pad, in_dim))
        y_pad = pl.pallas_call(
            _linear_vpu_kernel,
            out_shape=jax.ShapeDtypeStruct((m_pad, n_pad), x.dtype),
            grid=(m_pad // tm, n_pad // tn),
            in_specs=[
                pl.BlockSpec((tm, in_dim), lambda i, j: (i, 0)),
                pl.BlockSpec((in_dim, tn), lambda i, j: (0, j)),
                pl.BlockSpec((1, tn), lambda i, j: (0, j)),
            ],
            out_specs=pl.BlockSpec((tm, tn), lambda i, j: (i, j)),
            compiler_params=pltpu.CompilerParams(
                dimension_semantics=("parallel", "parallel")),
        )(x_in, params.w_t, params.b)
    else:
        # ---------------- MXU path ------------------------------------------
        # N tiling: tn always divides n_pad (which is only 128-lane padded).
        # With a single M block, force >= 2 N blocks when possible so both
        # v7x TensorCores get work (no-op on single-TC v5e/v6e).
        single_m_block = (m_pad // tm) == 1
        if single_m_block and n_pad >= 2 * _LANE:
            tn = _largest_dividing_tile(n_pad, min(_MAX_TN, n_pad // 2), _LANE)
        else:
            tn = _largest_dividing_tile(n_pad, _MAX_TN, _LANE)

        # K tiling: single full-dim block when it fits (no x K-padding at all).
        if k_pad <= _MAX_TK:
            tk, k_grid = k_pad, 1                  # k_pad == in_dim here
            x_k = x
        else:
            tk = _largest_dividing_tile(k_pad, _MAX_TK, _LANE)
            k_grid = k_pad // tk
            x_k = x if in_dim == k_pad else _pad_to(x, (batch, k_pad))

        x_in = x_k if m_pad == batch else _pad_to(x_k, (m_pad, x_k.shape[1]))

        if k_grid == 1:
            y_pad = pl.pallas_call(
                _linear_mxu_k1_kernel,
                out_shape=jax.ShapeDtypeStruct((m_pad, n_pad), x.dtype),
                grid=(m_pad // tm, n_pad // tn),
                in_specs=[
                    pl.BlockSpec((tm, tk), lambda i, j: (i, 0)),
                    pl.BlockSpec((tk, tn), lambda i, j: (0, j)),
                    pl.BlockSpec((1, tn), lambda i, j: (0, j)),
                ],
                out_specs=pl.BlockSpec((tm, tn), lambda i, j: (i, j)),
                compiler_params=pltpu.CompilerParams(
                    dimension_semantics=("parallel", "parallel")),
            )(x_in, params.w_t, params.b)
        else:
            y_pad = pl.pallas_call(
                _linear_mxu_kernel,
                out_shape=jax.ShapeDtypeStruct((m_pad, n_pad), x.dtype),
                grid=(m_pad // tm, n_pad // tn, k_grid),
                in_specs=[
                    pl.BlockSpec((tm, tk), lambda i, j, k: (i, k)),
                    pl.BlockSpec((tk, tn), lambda i, j, k: (k, j)),
                    pl.BlockSpec((1, tn), lambda i, j, k: (0, j)),
                ],
                out_specs=pl.BlockSpec((tm, tn), lambda i, j, k: (i, j)),
                scratch_shapes=[pltpu.VMEM((tm, tn), jnp.float32)],
                compiler_params=pltpu.CompilerParams(
                    dimension_semantics=("parallel", "parallel", "arbitrary")),
            )(x_in, params.w_t, params.b)

    # Strip zero-padded rows / lanes only if any were added.
    if m_pad == batch and n_pad == params.out_dim:
        return y_pad
    return y_pad[:batch, :params.out_dim]


if __name__ == "__main__":
    key = jax.random.PRNGKey(0)
    k_x, k_p, k_x2, k_p2 = jax.random.split(key, 4)

    # --- Module defaults: input_dim=2, output_dim=3, batch=8 -> VPU path ---
    batch, input_dim, output_dim = 8, 2, 3
    x = jax.random.normal(k_x, (batch, input_dim), dtype=jnp.float32)
    weight, bias = init_linear_params(k_p, input_dim, output_dim)
    params = prepare_linear_params(weight, bias)

    y = linear_classifier_forward(x, params)
    jax.block_until_ready(y)

    y_ref = jnp.dot(x, weight.T, precision=jax.lax.Precision.HIGHEST) + bias
    assert y.shape == (batch, output_dim)
    assert jnp.allclose(y, y_ref, atol=1e-5, rtol=1e-5), "small-path mismatch"

    # --- Larger classifier head -> single-K-step MXU path (tn divides 384) ---
    b2, d_in2, d_out2 = 64, 256, 384
    x2 = jax.random.normal(k_x2, (b2, d_in2), dtype=jnp.float32)
    w2, bias2 = init_linear_params(k_p2, d_in2, d_out2)
    params2 = prepare_linear_params(w2, bias2)

    y2 = linear_classifier_forward(x2, params2)
    jax.block_until_ready(y2)

    y2_ref = jnp.dot(x2, w2.T, precision=jax.lax.Precision.HIGHEST) + bias2
    assert y2.shape == (b2, d_out2)
    # Default-precision MXU dot (bf16 passes) vs f32 reference: loosen tolerance.
    assert jnp.allclose(y2, y2_ref, atol=2e-2, rtol=2e-2), "mxu-path mismatch"

    print("KERNEL_OK")
</pallas_src>

<mosaic_0001>
module attributes {stable_mosaic.version = 11 : i64} {
  func.func @_linear_vpu_kernel(%arg0: i32, %arg1: i32, %arg2: memref<8x2xf32, #tpu.memory_space<vmem>>, %arg3: memref<2x128xf32, #tpu.memory_space<vmem>>, %arg4: memref<1x128xf32, #tpu.memory_space<vmem>>, %arg5: memref<8x128xf32, #tpu.memory_space<vmem>>) attributes {dimension_semantics = [#tpu.dimension_semantics<parallel>, #tpu.dimension_semantics<parallel>], iteration_bounds = array<i64: 1, 1>, scalar_prefetch = 0 : i64, scratch_operands = 0 : i64, tpu.core_type = #tpu.core_type<tc>, window_params = [{transform_indices = @transform_0, window_bounds = array<i64: 8, 2>}, {transform_indices = @transform_1, window_bounds = array<i64: 2, 128>}, {transform_indices = @transform_2, window_bounds = array<i64: 1, 128>}, {transform_indices = @transform_3, window_bounds = array<i64: 8, 128>}]} {
    %c0 = arith.constant 0 : index
    %c0_0 = arith.constant 0 : index
    %0 = vector.load %arg2[%c0, %c0_0] : memref<8x2xf32, #tpu.memory_space<vmem>>, vector<8x2xf32>
    %c0_1 = arith.constant 0 : index
    %c0_2 = arith.constant 0 : index
    %1 = vector.load %arg3[%c0_1, %c0_2] : memref<2x128xf32, #tpu.memory_space<vmem>>, vector<2x128xf32>
    %c0_3 = arith.constant 0 : index
    %c0_4 = arith.constant 0 : index
    %2 = vector.load %arg4[%c0_3, %c0_4] : memref<1x128xf32, #tpu.memory_space<vmem>>, vector<1x128xf32>
    %3 = vector.shape_cast %2 : vector<1x128xf32> to vector<1x128xf32>
    %4 = vector.broadcast %3 : vector<1x128xf32> to vector<8x128xf32>
    %5 = vector.extract_strided_slice %0 {offsets = [0, 0], sizes = [8, 1], strides = [1, 1]} : vector<8x2xf32> to vector<8x1xf32>
    %6 = vector.extract_strided_slice %1 {offsets = [0, 0], sizes = [1, 128], strides = [1, 1]} : vector<2x128xf32> to vector<1x128xf32>
    %7 = vector.broadcast %5 : vector<8x1xf32> to vector<8x128xf32>
    %8 = vector.broadcast %6 : vector<1x128xf32> to vector<8x128xf32>
    %9 = arith.mulf %7, %8 : vector<8x128xf32>
    %10 = arith.addf %4, %9 : vector<8x128xf32>
    %11 = vector.extract_strided_slice %0 {offsets = [0, 1], sizes = [8, 1], strides = [1, 1]} : vector<8x2xf32> to vector<8x1xf32>
    %12 = vector.extract_strided_slice %1 {offsets = [1, 0], sizes = [1, 128], strides = [1, 1]} : vector<2x128xf32> to vector<1x128xf32>
    %13 = vector.broadcast %11 : vector<8x1xf32> to vector<8x128xf32>
    %14 = vector.broadcast %12 : vector<1x128xf32> to vector<8x128xf32>
    %15 = arith.mulf %13, %14 : vector<8x128xf32>
    %16 = arith.addf %10, %15 : vector<8x128xf32>
    %c0_5 = arith.constant 0 : index
    %c0_6 = arith.constant 0 : index
    %17 = vector.load %arg5[%c0_5, %c0_6] : memref<8x128xf32, #tpu.memory_space<vmem>>, vector<8x128xf32>
    tpu.vector_store %arg5[%c0_5, %c0_6], %16 {strides = array<i32>} : memref<8x128xf32, #tpu.memory_space<vmem>>, vector<8x128xf32>,
    return
  }
  func.func @transform_0(%arg0: i32, %arg1: i32) -> (i32, i32) {
    %c0_i32 = arith.constant 0 : i32
    %c0_i32_0 = arith.constant 0 : i32
    return %arg0, %c0_i32 : i32, i32
  }
  func.func @transform_1(%arg0: i32, %arg1: i32) -> (i32, i32) {
    %c0_i32 = arith.constant 0 : i32
    %c0_i32_0 = arith.constant 0 : i32
    return %c0_i32, %arg1 : i32, i32
  }
  func.func @transform_2(%arg0: i32, %arg1: i32) -> (i32, i32) {
    %c0_i32 = arith.constant 0 : i32
    %c0_i32_0 = arith.constant 0 : i32
    return %c0_i32, %arg1 : i32, i32
  }
  func.func @transform_3(%arg0: i32, %arg1: i32) -> (i32, i32) {
    %c0_i32 = arith.constant 0 : i32
    return %arg0, %arg1 : i32, i32
  }
}

</mosaic_0001>

<llo_original>
// kernel: tpu_custom_call.1
$region0: #{tpu_custom_call.1}
  #allocation0 [shape = 'u32[]', space=smem, size = 0x4, offset = 0x4, fixed_abs, tag = 'smem constant byte address 0x4 - core index']
  #allocation1 [shape = 'u32[72,128]{1,0:T(1,128)}', space=vmem, size = 0x9000, scoped, tag = 'internal scratch']
  %s0 = inlined_call_operand.vmem [shape: f32[8,2], index: 0, kind: input, shape index: {}]
  %s1 = inlined_call_operand.vmem [shape: f32[2,128], index: 1, kind: input, shape index: {}]
  %s2 = inlined_call_operand.vmem [shape: f32[1,128], index: 2, kind: input, shape index: {}]
  %s3 = inlined_call_operand.hbm [shape: f32[8,128], index: 3, kind: output, shape index: {}]
  %s4 = sld [smem:[#allocation0]]
  $region22: #{tpu_custom_call.1} parent=0
    _
  %s6 = ssub.s32 1, %s4
  %s7 = scalar_select 0, %s6, %s4
  $region1: #{tpu_custom_call.1} parent=0
    #allocation2 [shape = 'u8[4096]{0}', space=vmem, size = 0x1000, scoped, tag = 'output window, operand 0, single buffered']
    #allocation3 [shape = 's32[1]{0}', space=sflag, size = 0x4, scoped, tag = 'scoped memory for tpu_custom_call.1']
    %8 = vsyncpa [#allocation3], 0
    // Predicated region
    $region2: #{tpu_custom_call.1} parent=1 // pred_check
      _
    $region3: #{tpu_custom_call.1} parent=1 // pred_check_branch
      %10 = sbr.rel (0) target = $region5
    $region4: #{tpu_custom_call.1} parent=1 // pred_region
      _
    $region5: #{tpu_custom_call.1} parent=1 // pred_fallthru
      _
    // Predicated region
    $region6: #{tpu_custom_call.1} parent=1 // pred_check
      _
    $region7: #{tpu_custom_call.1} parent=1 // pred_check_branch
      %12 = sbr.rel (0) target = $region9
    $region8: #{tpu_custom_call.1} parent=1 // pred_region
      _
    $region9: #{tpu_custom_call.1} parent=1 // pred_fallthru
      _
    // Predicated region
    $region10: #{tpu_custom_call.1} parent=1 // pred_check
      _
    $region11: #{tpu_custom_call.1} parent=1 // pred_check_branch
      %14 = sbr.rel (0) target = $region13
    $region12: #{tpu_custom_call.1} parent=1 // pred_region
      _
    $region13: #{tpu_custom_call.1} parent=1 // pred_fallthru
      _
    %v15 = vld [vmem:[%s0] sm:$0xff]
    %v16 = vld [vmem:[%s1] sm:$0x3]
    %v17 = vld [vmem:[%s2] sm:$0x1]
    %v19 = vperm.slane %v17, 0
    %22 = vset.pattern.permute.xlu0 0
    %23 = vperm.xlu0 %22, %v15
    %v24 = vpop.permute.xlu0 %23
    %v26 = vperm.slane %v16, 0
    %v27 = vmul.f32 %v24, %v26
    %v28 = vadd.f32 %v19, %v27
    %29 = vset.pattern.permute.xlu0 1
    %30 = vperm.xlu0 %29, %v15
    %v31 = vpop.permute.xlu0 %30
    %v33 = vperm.slane %v16, 1
    %v34 = vmul.f32 %v31, %v33
    %v35 = vadd.f32 %v28, %v34
    %36 = vst [vmem:[#allocation2] sm:$0xff] %v35
    // Predicated region
    $region14: #{tpu_custom_call.1} parent=1 // pred_check
      _
    $region15: #{tpu_custom_call.1} parent=1 // pred_check_branch
      %38 = sbr.rel (0) target = $region17
    $region16: #{tpu_custom_call.1} parent=1 // pred_region
      %40 = vsyncadd [#allocation3], 0
      %s42 = sshll.u32 [#allocation2], 4
      %s43 = int_to_ptr.vmem [resolvable:$true] %s42
      %s44 = sshll.u32 %s3, 4
      %s45 = int_to_ptr.hbm [resolvable:$true] %s44
      %47 = dma.vmem_to_hbm [thread:$0]  %s43, 128, %s45, [#allocation3]
    $region17: #{tpu_custom_call.1} parent=1 // pred_fallthru
      _
    // Predicated region
    $region18: #{tpu_custom_call.1} parent=1 // pred_check
      _
    $region19: #{tpu_custom_call.1} parent=1 // pred_check_branch
      %49 = sbr.rel (0) target = $region21
    $region20: #{tpu_custom_call.1} parent=1 // pred_region
      %51 = dma.done [#allocation3], 128
    $region21: #{tpu_custom_call.1} parent=1 // pred_fallthru
      _
    %52 = vsyncpa [#allocation3], 1

</llo_original>
